<compile_context>
chip_gen: v7x
topology: tpu7x:2x2x1
jax: 0.10.0
libtpu: 0.0.40
codegen_flags: <defaults>
</compile_context>

<pallas_src>
import functools

import numpy as np
import jax
import jax.numpy as jnp
from jax.experimental import pallas as pl
from jax.experimental.pallas import tpu as pltpu


_LANE = 128     # lane width: last-dim alignment for unmasked vector stores
_SUBLANE = 8    # f32 sublane width: second-to-last-dim alignment
_MAX_TB = 512   # batch tile (multiple of 8); weights stay resident across tiles
# NOTE: for very wide packed widths on v6e/v7x, aligning Dp/Hp to 256 avoids
# half-empty 2x256x256 systolic passes; 128 is already lane-dense and plenty
# for the tiny widths here.


def _round_up(x, m):
    return (x + m - 1) // m * m


def _fused_linear_relu_kernel(x_ref, w_ref, b_ref, o_ref):
    # One block-diagonal matmul covers every branch: y = relu(x @ W_blk + b).
    # x/w are bf16; accumulation is f32 on the MXU; bias + ReLU stay in f32.
    y = jnp.dot(x_ref[...], w_ref[...], preferred_element_type=jnp.float32)
    y = y + b_ref[...]                      # (1, Hp) broadcasts over batch rows
    o_ref[...] = jnp.maximum(y, 0.0).astype(o_ref.dtype)


@functools.partial(jax.jit, static_argnames=("out_width",))
def _fused_forward(x_cat, w_packed, b_packed, out_width):
    """x_cat: (B, D) f32, w_packed: (Dp, Hp) bf16, b_packed: (1, Hp) f32.

    Returns relu(x_cat @ W_blockdiag + b)[:, :out_width] as (B, out_width) f32.
    """
    B, D = x_cat.shape
    Dp, Hp = w_packed.shape

    # Pad batch to a sublane/tile multiple and pad lanes up to Dp (the zero
    # columns hit zero weight rows, so the result is unchanged).
    Bp = _round_up(max(B, _SUBLANE), _SUBLANE)
    tb = min(_MAX_TB, Bp)
    Bp = _round_up(Bp, tb)
    x_pad = jnp.zeros((Bp, Dp), jnp.bfloat16).at[:B, :D].set(
        x_cat.astype(jnp.bfloat16))

    out = pl.pallas_call(
        _fused_linear_relu_kernel,
        out_shape=jax.ShapeDtypeStruct((Bp, Hp), jnp.float32),
        grid_spec=pl.GridSpec(
            grid=(Bp // tb,),
            in_specs=[
                pl.BlockSpec((tb, Dp), lambda i: (i, 0)),   # batch-tiled input
                pl.BlockSpec((Dp, Hp), lambda i: (0, 0)),   # resident weights
                pl.BlockSpec((1, Hp), lambda i: (0, 0)),    # resident bias
            ],
            out_specs=pl.BlockSpec((tb, Hp), lambda i: (i, 0)),
        ),
        compiler_params=pltpu.CompilerParams(
            # Batch tiles are independent -> shard across both TCs on v7x.
            dimension_semantics=("parallel",),
        ),
    )(x_pad, w_packed, b_packed)
    return out[:B, :out_width]


class DeepBSLBackbonePallas:
    """JAX/Pallas port of DeepBSL_backbone.

    config['features'] maps feature-name -> output width v (v == 0 skips the
    branch).  in_dims maps feature-name -> input feature width D_k.
    """

    def __init__(self, config, in_dims, key, dtype=jnp.float32):
        self.params = {}
        self.order = []
        for k, v in config["features"].items():
            if v == 0:
                continue
            d = in_dims[k]
            key, kw, kb = jax.random.split(key, 3)
            w = jax.random.normal(kw, (d, v), dtype) / jnp.sqrt(
                jnp.asarray(d, dtype))
            b = jax.random.normal(kb, (1, v), dtype) * jnp.asarray(0.01, dtype)
            self.params[k] = (w, b)
            self.order.append(k)
        self._packed_cache = {}

    def _pack(self, keys):
        """Block-diagonal bf16 weight (Dp, Hp) + f32 bias (1, Hp), padded to
        lane-dense (multiple-of-128) widths, for the given branch order."""
        keys = tuple(keys)
        cached = self._packed_cache.get(keys)
        if cached is not None:
            return cached
        d_tot = sum(self.params[k][0].shape[0] for k in keys)
        h_tot = sum(self.params[k][0].shape[1] for k in keys)
        Dp = _round_up(d_tot, _LANE)
        Hp = _round_up(h_tot, _LANE)
        w_np = np.zeros((Dp, Hp), np.float32)
        b_np = np.zeros((1, Hp), np.float32)
        do = ho = 0
        for k in keys:
            w, b = self.params[k]
            d, h = w.shape
            w_np[do:do + d, ho:ho + h] = np.asarray(w, np.float32)
            b_np[:, ho:ho + h] = np.asarray(b, np.float32)
            do += d
            ho += h
        packed = (jnp.asarray(w_np, jnp.bfloat16),
                  jnp.asarray(b_np, jnp.float32),
                  h_tot)
        self._packed_cache[keys] = packed
        return packed

    def __call__(self, x):
        # Mirrors the PyTorch forward: iterate x.items() order and concat the
        # per-branch features along dim=1 (column order follows the caller's
        # dict order, same footgun as the original module).
        keys = [k for k in x.keys()]
        w_packed, b_packed, h_tot = self._pack(keys)
        x_cat = jnp.concatenate([x[k] for k in keys], axis=1)
        return _fused_forward(x_cat, w_packed, b_packed, h_tot)


if __name__ == "__main__":
    key = jax.random.PRNGKey(0)

    # Small synthetic config: two active branches, one disabled (v == 0).
    config = {"features": {"hrtf": 32, "anthro": 16, "spectrum": 0}}
    in_dims = {"hrtf": 24, "anthro": 12}

    k_model, k_hrtf, k_anthro = jax.random.split(key, 3)
    model = DeepBSLBackbonePallas(config, in_dims, k_model)

    B = 2
    x = {
        "hrtf": jax.random.normal(k_hrtf, (B, in_dims["hrtf"]), jnp.float32),
        "anthro": jax.random.normal(k_anthro, (B, in_dims["anthro"]), jnp.float32),
    }

    feat = jax.block_until_ready(model(x))

    # Reference in plain JAX with the same bf16 operand cast / f32 accumulation.
    ref = []
    for k, v in x.items():
        w, b = model.params[k]
        y = jnp.dot(v.astype(jnp.bfloat16), w.astype(jnp.bfloat16),
                    preferred_element_type=jnp.float32) + b
        ref.append(jnp.maximum(y, 0.0))
    ref = jnp.concatenate(ref, axis=1)

    assert feat.shape == (B, 32 + 16), feat.shape
    err = float(jnp.max(jnp.abs(feat - ref)))
    assert jnp.allclose(feat, ref, atol=1e-2, rtol=1e-2), err

    print("KERNEL_OK")
</pallas_src>

<mosaic_0001>
module attributes {stable_mosaic.version = 11 : i64} {
  func.func @_fused_linear_relu_kernel(%arg0: i32, %arg1: memref<8x128xbf16, #tpu.memory_space<vmem>>, %arg2: memref<128x128xbf16, #tpu.memory_space<vmem>>, %arg3: memref<1x128xf32, #tpu.memory_space<vmem>>, %arg4: memref<8x128xf32, #tpu.memory_space<vmem>>) attributes {dimension_semantics = [#tpu.dimension_semantics<parallel>], iteration_bounds = array<i64: 1>, scalar_prefetch = 0 : i64, scratch_operands = 0 : i64, tpu.core_type = #tpu.core_type<tc>, window_params = [{transform_indices = @transform_0, window_bounds = array<i64: 8, 128>}, {pipeline_mode = #tpu.pipeline_mode<synchronous>, transform_indices = @transform_1, window_bounds = array<i64: 128, 128>}, {pipeline_mode = #tpu.pipeline_mode<synchronous>, transform_indices = @transform_2, window_bounds = array<i64: 1, 128>}, {transform_indices = @transform_3, window_bounds = array<i64: 8, 128>}]} {
    %c0 = arith.constant 0 : index
    %c0_0 = arith.constant 0 : index
    %0 = vector.load %arg1[%c0, %c0_0] : memref<8x128xbf16, #tpu.memory_space<vmem>>, vector<8x128xbf16>
    %c0_1 = arith.constant 0 : index
    %c0_2 = arith.constant 0 : index
    %1 = vector.load %arg2[%c0_1, %c0_2] : memref<128x128xbf16, #tpu.memory_space<vmem>>, vector<128x128xbf16>
    %cst = arith.constant dense<0.000000e+00> : vector<8x128xf32>
    %2 = tpu.matmul %0, %1, %cst {dimension_numbers = #tpu.dot_dimension_numbers<[1], [0], [0], [1], [0, 0, 1, 1], [], []>} : vector<8x128xbf16>, vector<128x128xbf16>, vector<8x128xf32> -> vector<8x128xf32>
    %c0_3 = arith.constant 0 : index
    %c0_4 = arith.constant 0 : index
    %3 = vector.load %arg3[%c0_3, %c0_4] : memref<1x128xf32, #tpu.memory_space<vmem>>, vector<1x128xf32>
    %4 = vector.broadcast %3 : vector<1x128xf32> to vector<8x128xf32>
    %5 = arith.addf %2, %4 : vector<8x128xf32>
    %cst_5 = arith.constant 0.000000e+00 : f32
    %6 = vector.broadcast %cst_5 : f32 to vector<8x128xf32>
    %7 = arith.maximumf %5, %6 : vector<8x128xf32>
    %c0_6 = arith.constant 0 : index
    %c0_7 = arith.constant 0 : index
    %8 = vector.load %arg4[%c0_6, %c0_7] : memref<8x128xf32, #tpu.memory_space<vmem>>, vector<8x128xf32>
    tpu.vector_store %arg4[%c0_6, %c0_7], %7 {strides = array<i32>} : memref<8x128xf32, #tpu.memory_space<vmem>>, vector<8x128xf32>,
    return
  }
  func.func @transform_0(%arg0: i32) -> (i32, i32) {
    %c0_i32 = arith.constant 0 : i32
    %c0_i32_0 = arith.constant 0 : i32
    return %arg0, %c0_i32 : i32, i32
  }
  func.func @transform_1(%arg0: i32) -> (i32, i32) {
    %c0_i32 = arith.constant 0 : i32
    %c0_i32_0 = arith.constant 0 : i32
    %c0_i32_1 = arith.constant 0 : i32
    return %c0_i32, %c0_i32_0 : i32, i32
  }
  func.func @transform_2(%arg0: i32) -> (i32, i32) {
    %c0_i32 = arith.constant 0 : i32
    %c0_i32_0 = arith.constant 0 : i32
    %c0_i32_1 = arith.constant 0 : i32
    return %c0_i32, %c0_i32_0 : i32, i32
  }
  func.func @transform_3(%arg0: i32) -> (i32, i32) {
    %c0_i32 = arith.constant 0 : i32
    %c0_i32_0 = arith.constant 0 : i32
    return %arg0, %c0_i32 : i32, i32
  }
}

</mosaic_0001>

<llo_original>
// kernel: _fused_forward.1
$region0: #{_fused_forward.1}
  #allocation0 [shape = 'u32[]', space=smem, size = 0x4, offset = 0x4, fixed_abs, tag = 'smem constant byte address 0x4 - core index']
  #allocation1 [shape = 'u32[144,128]{1,0:T(1,128)}', space=vmem, size = 0x12000, scoped, tag = 'internal scratch']
  %s0 = inlined_call_operand.vmem [shape: bf16[8,128], index: 0, kind: input, shape index: {}]
  %s1 = inlined_call_operand.hbm [shape: bf16[128,128], index: 1, kind: input, shape index: {}]
  %s2 = inlined_call_operand.vmem [shape: f32[1,128], index: 2, kind: input, shape index: {}]
  %s3 = inlined_call_operand.vmem [shape: f32[8,128], index: 3, kind: output, shape index: {}]
  %s4 = sld [smem:[#allocation0]]
  $region26: #{_fused_forward.1} parent=0
    _
  %s6 = ssub.s32 1, %s4
  %s7 = scalar_select 0, %s6, %s4
  $region1: #{_fused_forward.1} parent=0
    #allocation2 [shape = 'u8[32768]{0}', space=vmem, size = 0x8000, scoped, tag = 'input window, operand 1, single buffered']
    #allocation3 [shape = 's32[1]{0}', space=sflag, size = 0x4, scoped, tag = 'scoped memory for _fused_forward.1']
    %8 = vsyncpa [#allocation3], 0
    // Predicated region
    $region2: #{_fused_forward.1} parent=1 // pred_check
      _
    $region3: #{_fused_forward.1} parent=1 // pred_check_branch
      %10 = sbr.rel (0) target = $region5
    $region4: #{_fused_forward.1} parent=1 // pred_region
      _
    $region5: #{_fused_forward.1} parent=1 // pred_fallthru
      _
    // Predicated region
    $region6: #{_fused_forward.1} parent=1 // pred_check
      _
    $region7: #{_fused_forward.1} parent=1 // pred_check_branch
      %12 = sbr.rel (0) target = $region9
    $region8: #{_fused_forward.1} parent=1 // pred_region
      %s14 = ssub.s32 1024, 1024
      %15 = vsyncadd [#allocation3], %s14
      %s16 = sshll.u32 [#allocation2], 4
      %s17 = int_to_ptr.vmem [resolvable:$true] %s16
      %22 = dma.hbm_to_vmem [thread:$0]  %s1, 1024, %s17, [#allocation3], 64, 64, 4
    $region9: #{_fused_forward.1} parent=1 // pred_fallthru
      _
    // Predicated region
    $region10: #{_fused_forward.1} parent=1 // pred_check
      _
    $region11: #{_fused_forward.1} parent=1 // pred_check_branch
      %24 = sbr.rel (0) target = $region13
    $region12: #{_fused_forward.1} parent=1 // pred_region
      _
    $region13: #{_fused_forward.1} parent=1 // pred_fallthru
      _
    // Predicated region
    $region14: #{_fused_forward.1} parent=1 // pred_check
      _
    $region15: #{_fused_forward.1} parent=1 // pred_check_branch
      %26 = sbr.rel (0) target = $region17
    $region16: #{_fused_forward.1} parent=1 // pred_region
      %27 = dma.done [#allocation3], 1024
    $region17: #{_fused_forward.1} parent=1 // pred_fallthru
      _
    %v29 = vld [vmem:[%s0] sm:$0xf]
    %v30 = vld [vmem:[#allocation2] sm:$0xf]
    %v31 = vld [vmem:[#allocation2 + $0x4] sm:$0xf]
    %v32 = vld [vmem:[#allocation2 + $0x8] sm:$0xf]
    %v33 = vld [vmem:[#allocation2 + $0xc] sm:$0xf]
    %v34 = vld [vmem:[#allocation2 + $0x10] sm:$0xf]
    %v35 = vld [vmem:[#allocation2 + $0x14] sm:$0xf]
    %v36 = vld [vmem:[#allocation2 + $0x18] sm:$0xf]
    %v37 = vld [vmem:[#allocation2 + $0x1c] sm:$0xf]
    %v38 = vld [vmem:[#allocation2 + $0x20] sm:$0xf]
    %v39 = vld [vmem:[#allocation2 + $0x24] sm:$0xf]
    %v40 = vld [vmem:[#allocation2 + $0x28] sm:$0xf]
    %v41 = vld [vmem:[#allocation2 + $0x2c] sm:$0xf]
    %v42 = vld [vmem:[#allocation2 + $0x30] sm:$0xf]
    %v43 = vld [vmem:[#allocation2 + $0x34] sm:$0xf]
    %v44 = vld [vmem:[#allocation2 + $0x38] sm:$0xf]
    %v45 = vld [vmem:[#allocation2 + $0x3c] sm:$0xf]
    %v46 = vld [vmem:[%s2] sm:$0x1]
    %v48 = vlaneseq
    %v49 = vshrl.u32 %v48, 7
    %v50 = vsub.s32 0, %v49
    %v51 = vrot.slane %v46, %v50
    %v69 = vunpack.c.l.b16 %v30
    %v70 = vunpack.c.l.b16 %v31
    %v71 = vunpack.c.l.b16 %v32
    %v72 = vunpack.c.l.b16 %v33
    %v73 = vunpack.c.l.b16 %v34
    %v74 = vunpack.c.l.b16 %v35
    %v75 = vunpack.c.l.b16 %v36
    %v76 = vunpack.c.l.b16 %v37
    %v77 = vunpack.c.l.b16 %v38
    %v78 = vunpack.c.l.b16 %v39
    %v79 = vunpack.c.l.b16 %v40
    %v80 = vunpack.c.l.b16 %v41
    %v81 = vunpack.c.l.b16 %v42
    %v82 = vunpack.c.l.b16 %v43
    %v83 = vunpack.c.l.b16 %v44
    %v84 = vunpack.c.l.b16 %v45
    %v85 = vpack.c.b16 %v70, %v69
    %v86 = vpack.c.b16 %v72, %v71
    %v87 = vpack.c.b16 %v74, %v73
    %v88 = vpack.c.b16 %v76, %v75
    %v89 = vpack.c.b16 %v78, %v77
    %v90 = vpack.c.b16 %v80, %v79
    %v91 = vpack.c.b16 %v82, %v81
    %v92 = vpack.c.b16 %v84, %v83
    %101 = vmatprep.subr.bf16.mxu0 0
    %102 = vmatpush1.bf16.msra.mxu0 %v85
    %103 = vmatprep.subr.bf16.mxu0 0
    %104 = vmatpush1.bf16.msra.mxu0 %v86
    %105 = vmatprep.subr.bf16.mxu0 0
    %106 = vmatpush1.bf16.msra.mxu0 %v87
    %107 = vmatprep.subr.bf16.mxu0 0
    %108 = vmatpush1.bf16.msra.mxu0 %v88
    %109 = vmatprep.subr.bf16.mxu0 0
    %110 = vmatpush1.bf16.msra.mxu0 %v89
    %111 = vmatprep.subr.bf16.mxu0 0
    %112 = vmatpush1.bf16.msra.mxu0 %v90
    %113 = vmatprep.subr.bf16.mxu0 0
    %114 = vmatpush1.bf16.msra.mxu0 %v91
    %115 = vmatprep.subr.bf16.mxu0 0
    %116 = vmatpush1.bf16.msra.mxu0 %v92
    %117 = vmatprep.subr.bf16.mxu0 0
    %118 = vmatpush1.bf16.msra.mxu0 0
    %119 = vmatprep.subr.bf16.mxu0 0
    %120 = vmatpush1.bf16.msra.mxu0 0
    %121 = vmatprep.subr.bf16.mxu0 0
    %122 = vmatpush1.bf16.msra.mxu0 0
    %123 = vmatprep.subr.bf16.mxu0 0
    %124 = vmatpush1.bf16.msra.mxu0 0
    %125 = vmatprep.subr.bf16.mxu0 0
    %126 = vmatpush1.bf16.msra.mxu0 0
    %127 = vmatprep.subr.bf16.mxu0 0
    %128 = vmatpush1.bf16.msra.mxu0 0
    %129 = vmatprep.subr.bf16.mxu0 0
    %130 = vmatpush1.bf16.msra.mxu0 0
    %131 = vmatprep.subr.bf16.mxu0 0
    %132 = vmatpush1.bf16.msra.mxu0 0
    %133 = vmatprep.mubr.bf16.mxu0 0
    %134 = vmatmul.mubr.bf16.gmra.mrb[0].mxu0 %v29
    %v135 = vpop.f32.mrb[0].mxu0
    %v136 = vadd.f32 %v51, %v135
    %v137 = vpop.f32.mrb[0].mxu0
    %v138 = vpop.f32.mrb[0].mxu0
    %v139 = vpop.f32.mrb[0].mxu0
    %140 = vdwg.mxu0
    %v141 = vmax.f32 %v136, 0.0
    %142 = vst [vmem:[%s3] sm:$0xff] %v141
    // Predicated region
    $region18: #{_fused_forward.1} parent=1 // pred_check
      _
    $region19: #{_fused_forward.1} parent=1 // pred_check_branch
      %144 = sbr.rel (0) target = $region21
    $region20: #{_fused_forward.1} parent=1 // pred_region
      _
    $region21: #{_fused_forward.1} parent=1 // pred_fallthru
      _
    // Predicated region
    $region22: #{_fused_forward.1} parent=1 // pred_check
      _
    $region23: #{_fused_forward.1} parent=1 // pred_check_branch
      %146 = sbr.rel (0) target = $region25
    $region24: #{_fused_forward.1} parent=1 // pred_region
      _
    $region25: #{_fused_forward.1} parent=1 // pred_fallthru
      _
    %147 = vsyncpa [#allocation3], 1

</llo_original>
